<compile_context>
chip_gen: v6e
topology: v6e:2x2x1
jax: 0.10.0
libtpu: 0.0.40
codegen_flags: <defaults>
</compile_context>

<pallas_src>
import functools

import jax
import jax.numpy as jnp
from jax.experimental import pallas as pl
from jax.experimental.pallas import tpu as pltpu


def _lstm_cls_kernel(xproj_ref, whh_ref, wlin_ref, blin_ref, out_ref,
                     *, seq_len, batch, hidden_dim):
    """Single-invocation kernel: LSTM recurrence + relu/linear/softmax head.

    xproj_ref : (S*B, 4H) f32, time-major rows of (x_t @ W_ih^T + b), with the
                i/f/o gate columns pre-scaled by 0.5 (single-tanh trick).
    whh_ref   : (H, 4H)   f32, W_hh^T with the same per-column pre-scaling.
    wlin_ref  : (H, Opad) f32, W_linear^T zero-padded to 128 lanes.
    blin_ref  : (1, Opad) f32, b_linear padded with -1e30 beyond the real O.
    out_ref   : (S*B, Opad) f32, softmax probabilities (time-major rows).
    """
    S, B, H = seq_len, batch, hidden_dim

    whh = whh_ref[...]                                   # (H, 4H), loop-invariant

    # initHidden(): zeros for h0 and c0 (carried as values, not refs)
    h = jnp.zeros((B, H), jnp.float32)
    c = jnp.zeros((B, H), jnp.float32)
    hs = []                                              # register-resident h_t

    # ---- serial recurrence: only h @ W_hh^T on the critical path ----
    for t in range(S):
        gates = xproj_ref[t * B:(t + 1) * B, :] + jnp.dot(
            h, whh, preferred_element_type=jnp.float32)  # (B, 4H) f32

        # ONE full-vreg EUP pass: columns were pre-scaled so that
        #   sigmoid(x) = 0.5*(tanh(x/2)+1)  for the i/f/o gates,
        #   tanh(x)                          for the g gate.
        tg = jnp.tanh(gates)
        i_g = 0.5 * (tg[:, 0 * H:1 * H] + 1.0)
        f_g = 0.5 * (tg[:, 1 * H:2 * H] + 1.0)
        g_g = tg[:, 2 * H:3 * H]
        o_g = 0.5 * (tg[:, 3 * H:4 * H] + 1.0)

        c = f_g * c + i_g * g_g
        h = o_g * jnp.tanh(c)
        hs.append(h)

    # ---- epilogue: relu -> linear -> softmax, batched over all timesteps ----
    hall = jnp.concatenate(hs, axis=0)                   # (S*B, H)
    relu_h = jnp.maximum(hall, 0.0)
    logits = jnp.dot(relu_h, wlin_ref[...],
                     preferred_element_type=jnp.float32) + blin_ref[...]
    m = jnp.max(logits, axis=-1, keepdims=True)
    e = jnp.exp(logits - m)                              # padded cols -> exactly 0
    probs = e * pl.reciprocal(jnp.sum(e, axis=-1, keepdims=True), approx=False)

    out_ref[...] = probs.astype(out_ref.dtype)           # single lane-dense store


def pack_params(params):
    """One-time parameter packing (outside the jitted per-call forward)."""
    emb = params["embedding"]                      # (vocab, E)
    w_ih = params["w_ih"]                          # (4H, E)
    w_hh = params["w_hh"]                          # (4H, H)
    b = params["b_ih"] + params["b_hh"]            # (4H,)
    w_lin = params["w_lin"]                        # (O, H)
    b_lin = params["b_lin"]                        # (O,)

    H = w_hh.shape[1]
    O = w_lin.shape[0]

    # 0.5 pre-scale on i/f/o gate columns (sigmoid via tanh identity), 1.0 on g.
    scale = jnp.concatenate([
        jnp.full((2 * H,), 0.5, jnp.float32),      # i, f
        jnp.ones((H,), jnp.float32),               # g
        jnp.full((H,), 0.5, jnp.float32),          # o
    ])[None, :]                                    # (1, 4H)

    # Fused embedding + input-projection lookup table (vocab is tiny).
    table = (jnp.dot(emb, w_ih.T, precision=jax.lax.Precision.HIGHEST)
             + b[None, :]) * scale                 # (vocab, 4H) f32
    whh_t = (w_hh.T * scale).astype(jnp.float32)   # (H, 4H)

    # Lane-dense classifier head: pad to a multiple of 128 lanes.
    o_pad = max(128, -(-O // 128) * 128)
    wlin_t = jnp.zeros((H, o_pad), jnp.float32).at[:, :O].set(w_lin.T)
    blin_p = jnp.full((1, o_pad), -1e30, jnp.float32).at[0, :O].set(b_lin)

    return {
        "xproj_table": table.astype(jnp.float32),
        "whh": whh_t,
        "wlin": wlin_t,
        "blin": blin_p,
        "b_lin": b_lin,                            # kept only for O's static shape
    }


def sentence_classifier_forward(tokens, input_lengths, packed):
    """tokens: (batch, seq) int32; input_lengths unused (see TODO above)."""
    del input_lengths
    table = packed["xproj_table"]                  # (vocab, 4H)
    whh = packed["whh"]                            # (H, 4H)
    wlin = packed["wlin"]                          # (H, Opad)
    blin = packed["blin"]                          # (1, Opad)
    O = packed["b_lin"].shape[0]

    B, S = tokens.shape
    H = whh.shape[0]
    G = whh.shape[1]
    o_pad = wlin.shape[1]

    # Embedding + input projection in one gather, directly time-major.
    # TODO(synk): could be folded into the kernel via scalar-prefetch token ids;
    #             kept as one XLA gather on a (vocab, 4H) table for simplicity.
    xproj = jnp.take(table, tokens.T.reshape(-1), axis=0)        # (S*B, 4H)

    kernel = functools.partial(_lstm_cls_kernel,
                               seq_len=S, batch=B, hidden_dim=H)

    out_pad = pl.pallas_call(
        kernel,
        out_shape=jax.ShapeDtypeStruct((S * B, o_pad), jnp.float32),
        grid_spec=pltpu.PrefetchScalarGridSpec(
            num_scalar_prefetch=0,
            grid=(1,),                                           # single kernel step
            in_specs=[
                pl.BlockSpec((S * B, G), lambda i: (0, 0)),      # xproj (time-major)
                pl.BlockSpec((H, G), lambda i: (0, 0)),          # W_hh^T (pre-scaled)
                pl.BlockSpec((H, o_pad), lambda i: (0, 0)),      # W_lin^T (padded)
                pl.BlockSpec((1, o_pad), lambda i: (0, 0)),      # b_lin (padded)
            ],
            out_specs=pl.BlockSpec((S * B, o_pad), lambda i: (0, 0)),
        ),
        compiler_params=pltpu.CompilerParams(
            dimension_semantics=("arbitrary",),
        ),
    )(xproj, whh, wlin, blin)

    # (S*B, Opad) -> real classes -> (S, B, O) -> batch-first (B, S, O).
    return jnp.transpose(out_pad[:, :O].reshape(S, B, O), (1, 0, 2))


def _reference_forward(tokens, params):
    """Pure-JAX f32 reference (embedding -> LSTM -> relu -> linear -> softmax)."""
    emb, w_ih, w_hh = params["embedding"], params["w_ih"], params["w_hh"]
    b = params["b_ih"] + params["b_hh"]
    w_lin, b_lin = params["w_lin"], params["b_lin"]
    B, S = tokens.shape
    H = w_hh.shape[1]
    x = jnp.take(emb, tokens, axis=0)                            # (B, S, E)
    h = jnp.zeros((B, H), jnp.float32)
    c = jnp.zeros((B, H), jnp.float32)
    hs = []
    for t in range(S):
        g = (jnp.dot(x[:, t, :], w_ih.T, precision=jax.lax.Precision.HIGHEST)
             + b + jnp.dot(h, w_hh.T, precision=jax.lax.Precision.HIGHEST))
        i = jax.nn.sigmoid(g[:, 0 * H:1 * H])
        f = jax.nn.sigmoid(g[:, 1 * H:2 * H])
        gg = jnp.tanh(g[:, 2 * H:3 * H])
        o = jax.nn.sigmoid(g[:, 3 * H:4 * H])
        c = f * c + i * gg
        h = o * jnp.tanh(c)
        hs.append(h)
    hseq = jnp.stack(hs, axis=1)                                 # (B, S, H)
    logits = (jnp.dot(jnp.maximum(hseq, 0.0), w_lin.T,
                      precision=jax.lax.Precision.HIGHEST) + b_lin)
    return jax.nn.softmax(logits, axis=-1)


def init_params(key, vocab_size, emb_dim, hidden_dim, output_dim):
    """Deterministic synthetic parameters (shapes match nn.LSTM / nn.Linear)."""
    ks = jax.random.split(key, 7)
    scale = 1.0 / jnp.sqrt(hidden_dim)
    u = lambda k, shape: jax.random.uniform(k, shape, jnp.float32, -scale, scale)
    return {
        "embedding": jax.random.normal(ks[0], (vocab_size, emb_dim), jnp.float32),
        "w_ih": u(ks[1], (4 * hidden_dim, emb_dim)),
        "w_hh": u(ks[2], (4 * hidden_dim, hidden_dim)),
        "b_ih": u(ks[3], (4 * hidden_dim,)),
        "b_hh": u(ks[4], (4 * hidden_dim,)),
        "w_lin": u(ks[5], (output_dim, hidden_dim)),
        "b_lin": u(ks[6], (output_dim,)),
    }


if __name__ == "__main__":
    # small shapes: batch=8, seq=8, embedding_dim=hidden_dim=32, vocab=50, classes=4
    batch, seq, emb_dim, hidden_dim, vocab, output_dim = 8, 8, 32, 32, 50, 4

    key = jax.random.PRNGKey(0)
    k_tok, k_len, k_par = jax.random.split(key, 3)

    tokens = jax.random.randint(k_tok, (batch, seq), 0, vocab, dtype=jnp.int32)
    lengths = jax.random.randint(k_len, (batch,), 1, seq + 1, dtype=jnp.int32)
    params = init_params(k_par, vocab, emb_dim, hidden_dim, output_dim)

    packed = pack_params(params)            # once per weight set, outside the jit
    forward = jax.jit(sentence_classifier_forward)
    probs = jax.block_until_ready(forward(tokens, lengths, packed))

    assert probs.shape == (batch, seq, output_dim)
    # each row of the class dim must sum to 1 (softmax)
    assert bool(jnp.allclose(jnp.sum(probs, axis=-1), 1.0, atol=1e-5))
    # parity vs a pure-JAX f32 reference of the same (fixed) forward path
    ref = _reference_forward(tokens, params)
    assert bool(jnp.allclose(probs, ref, atol=1e-3, rtol=1e-3))
    print("KERNEL_OK")
</pallas_src>

<mosaic_0001>
module attributes {stable_mosaic.version = 11 : i64} {
  func.func @_lstm_cls_kernel(%arg0: i32, %arg1: memref<64x128xf32, #tpu.memory_space<vmem>>, %arg2: memref<32x128xf32, #tpu.memory_space<vmem>>, %arg3: memref<32x128xf32, #tpu.memory_space<vmem>>, %arg4: memref<1x128xf32, #tpu.memory_space<vmem>>, %arg5: memref<64x128xf32, #tpu.memory_space<vmem>>) attributes {dimension_semantics = [#tpu.dimension_semantics<arbitrary>], iteration_bounds = array<i64: 1>, scalar_prefetch = 0 : i64, scratch_operands = 0 : i64, tpu.core_type = #tpu.core_type<tc>, window_params = [{pipeline_mode = #tpu.pipeline_mode<synchronous>, transform_indices = @transform_0, window_bounds = array<i64: 64, 128>}, {pipeline_mode = #tpu.pipeline_mode<synchronous>, transform_indices = @transform_1, window_bounds = array<i64: 32, 128>}, {pipeline_mode = #tpu.pipeline_mode<synchronous>, transform_indices = @transform_2, window_bounds = array<i64: 32, 128>}, {pipeline_mode = #tpu.pipeline_mode<synchronous>, transform_indices = @transform_3, window_bounds = array<i64: 1, 128>}, {pipeline_mode = #tpu.pipeline_mode<synchronous>, transform_indices = @transform_4, window_bounds = array<i64: 64, 128>}]} {
    %c0 = arith.constant 0 : index
    %c0_0 = arith.constant 0 : index
    %0 = vector.load %arg2[%c0, %c0_0] : memref<32x128xf32, #tpu.memory_space<vmem>>, vector<32x128xf32>
    %cst = arith.constant 0.000000e+00 : f32
    %1 = vector.broadcast %cst : f32 to vector<8x32xf32>
    %cst_1 = arith.constant 0.000000e+00 : f32
    %2 = vector.broadcast %cst_1 : f32 to vector<8x32xf32>
    %c0_2 = arith.constant 0 : index
    %c0_3 = arith.constant 0 : index
    %3 = vector.load %arg1[%c0_2, %c0_3] : memref<64x128xf32, #tpu.memory_space<vmem>>, vector<8x128xf32>
    %cst_4 = arith.constant dense<0.000000e+00> : vector<8x128xf32>
    %4 = tpu.matmul %1, %0, %cst_4 {dimension_numbers = #tpu.dot_dimension_numbers<[1], [0], [0], [1], [0, 0, 1, 1], [], []>} : vector<8x32xf32>, vector<32x128xf32>, vector<8x128xf32> -> vector<8x128xf32>
    %5 = arith.addf %3, %4 : vector<8x128xf32>
    %6 = math.tanh %5 : vector<8x128xf32>
    %7 = vector.extract_strided_slice %6 {offsets = [0, 0], sizes = [8, 32], strides = [1, 1]} : vector<8x128xf32> to vector<8x32xf32>
    %cst_5 = arith.constant 1.000000e+00 : f32
    %8 = vector.broadcast %cst_5 : f32 to vector<8x32xf32>
    %9 = arith.addf %7, %8 : vector<8x32xf32>
    %cst_6 = arith.constant 5.000000e-01 : f32
    %10 = vector.broadcast %cst_6 : f32 to vector<8x32xf32>
    %11 = arith.mulf %10, %9 : vector<8x32xf32>
    %12 = vector.extract_strided_slice %6 {offsets = [0, 32], sizes = [8, 32], strides = [1, 1]} : vector<8x128xf32> to vector<8x32xf32>
    %cst_7 = arith.constant 1.000000e+00 : f32
    %13 = vector.broadcast %cst_7 : f32 to vector<8x32xf32>
    %14 = arith.addf %12, %13 : vector<8x32xf32>
    %cst_8 = arith.constant 5.000000e-01 : f32
    %15 = vector.broadcast %cst_8 : f32 to vector<8x32xf32>
    %16 = arith.mulf %15, %14 : vector<8x32xf32>
    %17 = vector.extract_strided_slice %6 {offsets = [0, 64], sizes = [8, 32], strides = [1, 1]} : vector<8x128xf32> to vector<8x32xf32>
    %18 = vector.extract_strided_slice %6 {offsets = [0, 96], sizes = [8, 32], strides = [1, 1]} : vector<8x128xf32> to vector<8x32xf32>
    %cst_9 = arith.constant 1.000000e+00 : f32
    %19 = vector.broadcast %cst_9 : f32 to vector<8x32xf32>
    %20 = arith.addf %18, %19 : vector<8x32xf32>
    %cst_10 = arith.constant 5.000000e-01 : f32
    %21 = vector.broadcast %cst_10 : f32 to vector<8x32xf32>
    %22 = arith.mulf %21, %20 : vector<8x32xf32>
    %23 = arith.mulf %16, %2 : vector<8x32xf32>
    %24 = arith.mulf %11, %17 : vector<8x32xf32>
    %25 = arith.addf %23, %24 : vector<8x32xf32>
    %26 = math.tanh %25 : vector<8x32xf32>
    %27 = arith.mulf %22, %26 : vector<8x32xf32>
    %c8 = arith.constant 8 : index
    %c0_11 = arith.constant 0 : index
    %28 = vector.load %arg1[%c8, %c0_11] : memref<64x128xf32, #tpu.memory_space<vmem>>, vector<8x128xf32>
    %cst_12 = arith.constant dense<0.000000e+00> : vector<8x128xf32>
    %29 = tpu.matmul %27, %0, %cst_12 {dimension_numbers = #tpu.dot_dimension_numbers<[1], [0], [0], [1], [0, 0, 1, 1], [], []>} : vector<8x32xf32>, vector<32x128xf32>, vector<8x128xf32> -> vector<8x128xf32>
    %30 = arith.addf %28, %29 : vector<8x128xf32>
    %31 = math.tanh %30 : vector<8x128xf32>
    %32 = vector.extract_strided_slice %31 {offsets = [0, 0], sizes = [8, 32], strides = [1, 1]} : vector<8x128xf32> to vector<8x32xf32>
    %cst_13 = arith.constant 1.000000e+00 : f32
    %33 = vector.broadcast %cst_13 : f32 to vector<8x32xf32>
    %34 = arith.addf %32, %33 : vector<8x32xf32>
    %cst_14 = arith.constant 5.000000e-01 : f32
    %35 = vector.broadcast %cst_14 : f32 to vector<8x32xf32>
    %36 = arith.mulf %35, %34 : vector<8x32xf32>
    %37 = vector.extract_strided_slice %31 {offsets = [0, 32], sizes = [8, 32], strides = [1, 1]} : vector<8x128xf32> to vector<8x32xf32>
    %cst_15 = arith.constant 1.000000e+00 : f32
    %38 = vector.broadcast %cst_15 : f32 to vector<8x32xf32>
    %39 = arith.addf %37, %38 : vector<8x32xf32>
    %cst_16 = arith.constant 5.000000e-01 : f32
    %40 = vector.broadcast %cst_16 : f32 to vector<8x32xf32>
    %41 = arith.mulf %40, %39 : vector<8x32xf32>
    %42 = vector.extract_strided_slice %31 {offsets = [0, 64], sizes = [8, 32], strides = [1, 1]} : vector<8x128xf32> to vector<8x32xf32>
    %43 = vector.extract_strided_slice %31 {offsets = [0, 96], sizes = [8, 32], strides = [1, 1]} : vector<8x128xf32> to vector<8x32xf32>
    %cst_17 = arith.constant 1.000000e+00 : f32
    %44 = vector.broadcast %cst_17 : f32 to vector<8x32xf32>
    %45 = arith.addf %43, %44 : vector<8x32xf32>
    %cst_18 = arith.constant 5.000000e-01 : f32
    %46 = vector.broadcast %cst_18 : f32 to vector<8x32xf32>
    %47 = arith.mulf %46, %45 : vector<8x32xf32>
    %48 = arith.mulf %41, %25 : vector<8x32xf32>
    %49 = arith.mulf %36, %42 : vector<8x32xf32>
    %50 = arith.addf %48, %49 : vector<8x32xf32>
    %51 = math.tanh %50 : vector<8x32xf32>
    %52 = arith.mulf %47, %51 : vector<8x32xf32>
    %c16 = arith.constant 16 : index
    %c0_19 = arith.constant 0 : index
    %53 = vector.load %arg1[%c16, %c0_19] : memref<64x128xf32, #tpu.memory_space<vmem>>, vector<8x128xf32>
    %cst_20 = arith.constant dense<0.000000e+00> : vector<8x128xf32>
    %54 = tpu.matmul %52, %0, %cst_20 {dimension_numbers = #tpu.dot_dimension_numbers<[1], [0], [0], [1], [0, 0, 1, 1], [], []>} : vector<8x32xf32>, vector<32x128xf32>, vector<8x128xf32> -> vector<8x128xf32>
    %55 = arith.addf %53, %54 : vector<8x128xf32>
    %56 = math.tanh %55 : vector<8x128xf32>
    %57 = vector.extract_strided_slice %56 {offsets = [0, 0], sizes = [8, 32], strides = [1, 1]} : vector<8x128xf32> to vector<8x32xf32>
    %cst_21 = arith.constant 1.000000e+00 : f32
    %58 = vector.broadcast %cst_21 : f32 to vector<8x32xf32>
    %59 = arith.addf %57, %58 : vector<8x32xf32>
    %cst_22 = arith.constant 5.000000e-01 : f32
    %60 = vector.broadcast %cst_22 : f32 to vector<8x32xf32>
    %61 = arith.mulf %60, %59 : vector<8x32xf32>
    %62 = vector.extract_strided_slice %56 {offsets = [0, 32], sizes = [8, 32], strides = [1, 1]} : vector<8x128xf32> to vector<8x32xf32>
    %cst_23 = arith.constant 1.000000e+00 : f32
    %63 = vector.broadcast %cst_23 : f32 to vector<8x32xf32>
    %64 = arith.addf %62, %63 : vector<8x32xf32>
    %cst_24 = arith.constant 5.000000e-01 : f32
    %65 = vector.broadcast %cst_24 : f32 to vector<8x32xf32>
    %66 = arith.mulf %65, %64 : vector<8x32xf32>
    %67 = vector.extract_strided_slice %56 {offsets = [0, 64], sizes = [8, 32], strides = [1, 1]} : vector<8x128xf32> to vector<8x32xf32>
    %68 = vector.extract_strided_slice %56 {offsets = [0, 96], sizes = [8, 32], strides = [1, 1]} : vector<8x128xf32> to vector<8x32xf32>
    %cst_25 = arith.constant 1.000000e+00 : f32
    %69 = vector.broadcast %cst_25 : f32 to vector<8x32xf32>
    %70 = arith.addf %68, %69 : vector<8x32xf32>
    %cst_26 = arith.constant 5.000000e-01 : f32
    %71 = vector.broadcast %cst_26 : f32 to vector<8x32xf32>
    %72 = arith.mulf %71, %70 : vector<8x32xf32>
    %73 = arith.mulf %66, %50 : vector<8x32xf32>
    %74 = arith.mulf %61, %67 : vector<8x32xf32>
    %75 = arith.addf %73, %74 : vector<8x32xf32>
    %76 = math.tanh %75 : vector<8x32xf32>
    %77 = arith.mulf %72, %76 : vector<8x32xf32>
    %c24 = arith.constant 24 : index
    %c0_27 = arith.constant 0 : index
    %78 = vector.load %arg1[%c24, %c0_27] : memref<64x128xf32, #tpu.memory_space<vmem>>, vector<8x128xf32>
    %cst_28 = arith.constant dense<0.000000e+00> : vector<8x128xf32>
    %79 = tpu.matmul %77, %0, %cst_28 {dimension_numbers = #tpu.dot_dimension_numbers<[1], [0], [0], [1], [0, 0, 1, 1], [], []>} : vector<8x32xf32>, vector<32x128xf32>, vector<8x128xf32> -> vector<8x128xf32>
    %80 = arith.addf %78, %79 : vector<8x128xf32>
    %81 = math.tanh %80 : vector<8x128xf32>
    %82 = vector.extract_strided_slice %81 {offsets = [0, 0], sizes = [8, 32], strides = [1, 1]} : vector<8x128xf32> to vector<8x32xf32>
    %cst_29 = arith.constant 1.000000e+00 : f32
    %83 = vector.broadcast %cst_29 : f32 to vector<8x32xf32>
    %84 = arith.addf %82, %83 : vector<8x32xf32>
    %cst_30 = arith.constant 5.000000e-01 : f32
    %85 = vector.broadcast %cst_30 : f32 to vector<8x32xf32>
    %86 = arith.mulf %85, %84 : vector<8x32xf32>
    %87 = vector.extract_strided_slice %81 {offsets = [0, 32], sizes = [8, 32], strides = [1, 1]} : vector<8x128xf32> to vector<8x32xf32>
    %cst_31 = arith.constant 1.000000e+00 : f32
    %88 = vector.broadcast %cst_31 : f32 to vector<8x32xf32>
    %89 = arith.addf %87, %88 : vector<8x32xf32>
    %cst_32 = arith.constant 5.000000e-01 : f32
    %90 = vector.broadcast %cst_32 : f32 to vector<8x32xf32>
    %91 = arith.mulf %90, %89 : vector<8x32xf32>
    %92 = vector.extract_strided_slice %81 {offsets = [0, 64], sizes = [8, 32], strides = [1, 1]} : vector<8x128xf32> to vector<8x32xf32>
    %93 = vector.extract_strided_slice %81 {offsets = [0, 96], sizes = [8, 32], strides = [1, 1]} : vector<8x128xf32> to vector<8x32xf32>
    %cst_33 = arith.constant 1.000000e+00 : f32
    %94 = vector.broadcast %cst_33 : f32 to vector<8x32xf32>
    %95 = arith.addf %93, %94 : vector<8x32xf32>
    %cst_34 = arith.constant 5.000000e-01 : f32
    %96 = vector.broadcast %cst_34 : f32 to vector<8x32xf32>
    %97 = arith.mulf %96, %95 : vector<8x32xf32>
    %98 = arith.mulf %91, %75 : vector<8x32xf32>
    %99 = arith.mulf %86, %92 : vector<8x32xf32>
    %100 = arith.addf %98, %99 : vector<8x32xf32>
    %101 = math.tanh %100 : vector<8x32xf32>
    %102 = arith.mulf %97, %101 : vector<8x32xf32>
    %c32 = arith.constant 32 : index
    %c0_35 = arith.constant 0 : index
    %103 = vector.load %arg1[%c32, %c0_35] : memref<64x128xf32, #tpu.memory_space<vmem>>, vector<8x128xf32>
    %cst_36 = arith.constant dense<0.000000e+00> : vector<8x128xf32>
    %104 = tpu.matmul %102, %0, %cst_36 {dimension_numbers = #tpu.dot_dimension_numbers<[1], [0], [0], [1], [0, 0, 1, 1], [], []>} : vector<8x32xf32>, vector<32x128xf32>, vector<8x128xf32> -> vector<8x128xf32>
    %105 = arith.addf %103, %104 : vector<8x128xf32>
    %106 = math.tanh %105 : vector<8x128xf32>
    %107 = vector.extract_strided_slice %106 {offsets = [0, 0], sizes = [8, 32], strides = [1, 1]} : vector<8x128xf32> to vector<8x32xf32>
    %cst_37 = arith.constant 1.000000e+00 : f32
    %108 = vector.broadcast %cst_37 : f32 to vector<8x32xf32>
    %109 = arith.addf %107, %108 : vector<8x32xf32>
    %cst_38 = arith.constant 5.000000e-01 : f32
    %110 = vector.broadcast %cst_38 : f32 to vector<8x32xf32>
    %111 = arith.mulf %110, %109 : vector<8x32xf32>
    %112 = vector.extract_strided_slice %106 {offsets = [0, 32], sizes = [8, 32], strides = [1, 1]} : vector<8x128xf32> to vector<8x32xf32>
    %cst_39 = arith.constant 1.000000e+00 : f32
    %113 = vector.broadcast %cst_39 : f32 to vector<8x32xf32>
    %114 = arith.addf %112, %113 : vector<8x32xf32>
    %cst_40 = arith.constant 5.000000e-01 : f32
    %115 = vector.broadcast %cst_40 : f32 to vector<8x32xf32>
    %116 = arith.mulf %115, %114 : vector<8x32xf32>
    %117 = vector.extract_strided_slice %106 {offsets = [0, 64], sizes = [8, 32], strides = [1, 1]} : vector<8x128xf32> to vector<8x32xf32>
    %118 = vector.extract_strided_slice %106 {offsets = [0, 96], sizes = [8, 32], strides = [1, 1]} : vector<8x128xf32> to vector<8x32xf32>
    %cst_41 = arith.constant 1.000000e+00 : f32
    %119 = vector.broadcast %cst_41 : f32 to vector<8x32xf32>
    %120 = arith.addf %118, %119 : vector<8x32xf32>
    %cst_42 = arith.constant 5.000000e-01 : f32
    %121 = vector.broadcast %cst_42 : f32 to vector<8x32xf32>
    %122 = arith.mulf %121, %120 : vector<8x32xf32>
    %123 = arith.mulf %116, %100 : vector<8x32xf32>
    %124 = arith.mulf %111, %117 : vector<8x32xf32>
    %125 = arith.addf %123, %124 : vector<8x32xf32>
    %126 = math.tanh %125 : vector<8x32xf32>
    %127 = arith.mulf %122, %126 : vector<8x32xf32>
    %c40 = arith.constant 40 : index
    %c0_43 = arith.constant 0 : index
    %128 = vector.load %arg1[%c40, %c0_43] : memref<64x128xf32, #tpu.memory_space<vmem>>, vector<8x128xf32>
    %cst_44 = arith.constant dense<0.000000e+00> : vector<8x128xf32>
    %129 = tpu.matmul %127, %0, %cst_44 {dimension_numbers = #tpu.dot_dimension_numbers<[1], [0], [0], [1], [0, 0, 1, 1], [], []>} : vector<8x32xf32>, vector<32x128xf32>, vector<8x128xf32> -> vector<8x128xf32>
    %130 = arith.addf %128, %129 : vector<8x128xf32>
    %131 = math.tanh %130 : vector<8x128xf32>
    %132 = vector.extract_strided_slice %131 {offsets = [0, 0], sizes = [8, 32], strides = [1, 1]} : vector<8x128xf32> to vector<8x32xf32>
    %cst_45 = arith.constant 1.000000e+00 : f32
    %133 = vector.broadcast %cst_45 : f32 to vector<8x32xf32>
    %134 = arith.addf %132, %133 : vector<8x32xf32>
    %cst_46 = arith.constant 5.000000e-01 : f32
    %135 = vector.broadcast %cst_46 : f32 to vector<8x32xf32>
    %136 = arith.mulf %135, %134 : vector<8x32xf32>
    %137 = vector.extract_strided_slice %131 {offsets = [0, 32], sizes = [8, 32], strides = [1, 1]} : vector<8x128xf32> to vector<8x32xf32>
    %cst_47 = arith.constant 1.000000e+00 : f32
    %138 = vector.broadcast %cst_47 : f32 to vector<8x32xf32>
    %139 = arith.addf %137, %138 : vector<8x32xf32>
    %cst_48 = arith.constant 5.000000e-01 : f32
    %140 = vector.broadcast %cst_48 : f32 to vector<8x32xf32>
    %141 = arith.mulf %140, %139 : vector<8x32xf32>
    %142 = vector.extract_strided_slice %131 {offsets = [0, 64], sizes = [8, 32], strides = [1, 1]} : vector<8x128xf32> to vector<8x32xf32>
    %143 = vector.extract_strided_slice %131 {offsets = [0, 96], sizes = [8, 32], strides = [1, 1]} : vector<8x128xf32> to vector<8x32xf32>
    %cst_49 = arith.constant 1.000000e+00 : f32
    %144 = vector.broadcast %cst_49 : f32 to vector<8x32xf32>
    %145 = arith.addf %143, %144 : vector<8x32xf32>
    %cst_50 = arith.constant 5.000000e-01 : f32
    %146 = vector.broadcast %cst_50 : f32 to vector<8x32xf32>
    %147 = arith.mulf %146, %145 : vector<8x32xf32>
    %148 = arith.mulf %141, %125 : vector<8x32xf32>
    %149 = arith.mulf %136, %142 : vector<8x32xf32>
    %150 = arith.addf %148, %149 : vector<8x32xf32>
    %151 = math.tanh %150 : vector<8x32xf32>
    %152 = arith.mulf %147, %151 : vector<8x32xf32>
    %c48 = arith.constant 48 : index
    %c0_51 = arith.constant 0 : index
    %153 = vector.load %arg1[%c48, %c0_51] : memref<64x128xf32, #tpu.memory_space<vmem>>, vector<8x128xf32>
    %cst_52 = arith.constant dense<0.000000e+00> : vector<8x128xf32>
    %154 = tpu.matmul %152, %0, %cst_52 {dimension_numbers = #tpu.dot_dimension_numbers<[1], [0], [0], [1], [0, 0, 1, 1], [], []>} : vector<8x32xf32>, vector<32x128xf32>, vector<8x128xf32> -> vector<8x128xf32>
    %155 = arith.addf %153, %154 : vector<8x128xf32>
    %156 = math.tanh %155 : vector<8x128xf32>
    %157 = vector.extract_strided_slice %156 {offsets = [0, 0], sizes = [8, 32], strides = [1, 1]} : vector<8x128xf32> to vector<8x32xf32>
    %cst_53 = arith.constant 1.000000e+00 : f32
    %158 = vector.broadcast %cst_53 : f32 to vector<8x32xf32>
    %159 = arith.addf %157, %158 : vector<8x32xf32>
    %cst_54 = arith.constant 5.000000e-01 : f32
    %160 = vector.broadcast %cst_54 : f32 to vector<8x32xf32>
    %161 = arith.mulf %160, %159 : vector<8x32xf32>
    %162 = vector.extract_strided_slice %156 {offsets = [0, 32], sizes = [8, 32], strides = [1, 1]} : vector<8x128xf32> to vector<8x32xf32>
    %cst_55 = arith.constant 1.000000e+00 : f32
    %163 = vector.broadcast %cst_55 : f32 to vector<8x32xf32>
    %164 = arith.addf %162, %163 : vector<8x32xf32>
    %cst_56 = arith.constant 5.000000e-01 : f32
    %165 = vector.broadcast %cst_56 : f32 to vector<8x32xf32>
    %166 = arith.mulf %165, %164 : vector<8x32xf32>
    %167 = vector.extract_strided_slice %156 {offsets = [0, 64], sizes = [8, 32], strides = [1, 1]} : vector<8x128xf32> to vector<8x32xf32>
    %168 = vector.extract_strided_slice %156 {offsets = [0, 96], sizes = [8, 32], strides = [1, 1]} : vector<8x128xf32> to vector<8x32xf32>
    %cst_57 = arith.constant 1.000000e+00 : f32
    %169 = vector.broadcast %cst_57 : f32 to vector<8x32xf32>
    %170 = arith.addf %168, %169 : vector<8x32xf32>
    %cst_58 = arith.constant 5.000000e-01 : f32
    %171 = vector.broadcast %cst_58 : f32 to vector<8x32xf32>
    %172 = arith.mulf %171, %170 : vector<8x32xf32>
    %173 = arith.mulf %166, %150 : vector<8x32xf32>
    %174 = arith.mulf %161, %167 : vector<8x32xf32>
    %175 = arith.addf %173, %174 : vector<8x32xf32>
    %176 = math.tanh %175 : vector<8x32xf32>
    %177 = arith.mulf %172, %176 : vector<8x32xf32>
    %c56 = arith.constant 56 : index
    %c0_59 = arith.constant 0 : index
    %178 = vector.load %arg1[%c56, %c0_59] : memref<64x128xf32, #tpu.memory_space<vmem>>, vector<8x128xf32>
    %cst_60 = arith.constant dense<0.000000e+00> : vector<8x128xf32>
    %179 = tpu.matmul %177, %0, %cst_60 {dimension_numbers = #tpu.dot_dimension_numbers<[1], [0], [0], [1], [0, 0, 1, 1], [], []>} : vector<8x32xf32>, vector<32x128xf32>, vector<8x128xf32> -> vector<8x128xf32>
    %180 = arith.addf %178, %179 : vector<8x128xf32>
    %181 = math.tanh %180 : vector<8x128xf32>
    %182 = vector.extract_strided_slice %181 {offsets = [0, 0], sizes = [8, 32], strides = [1, 1]} : vector<8x128xf32> to vector<8x32xf32>
    %cst_61 = arith.constant 1.000000e+00 : f32
    %183 = vector.broadcast %cst_61 : f32 to vector<8x32xf32>
    %184 = arith.addf %182, %183 : vector<8x32xf32>
    %cst_62 = arith.constant 5.000000e-01 : f32
    %185 = vector.broadcast %cst_62 : f32 to vector<8x32xf32>
    %186 = arith.mulf %185, %184 : vector<8x32xf32>
    %187 = vector.extract_strided_slice %181 {offsets = [0, 32], sizes = [8, 32], strides = [1, 1]} : vector<8x128xf32> to vector<8x32xf32>
    %cst_63 = arith.constant 1.000000e+00 : f32
    %188 = vector.broadcast %cst_63 : f32 to vector<8x32xf32>
    %189 = arith.addf %187, %188 : vector<8x32xf32>
    %cst_64 = arith.constant 5.000000e-01 : f32
    %190 = vector.broadcast %cst_64 : f32 to vector<8x32xf32>
    %191 = arith.mulf %190, %189 : vector<8x32xf32>
    %192 = vector.extract_strided_slice %181 {offsets = [0, 64], sizes = [8, 32], strides = [1, 1]} : vector<8x128xf32> to vector<8x32xf32>
    %193 = vector.extract_strided_slice %181 {offsets = [0, 96], sizes = [8, 32], strides = [1, 1]} : vector<8x128xf32> to vector<8x32xf32>
    %cst_65 = arith.constant 1.000000e+00 : f32
    %194 = vector.broadcast %cst_65 : f32 to vector<8x32xf32>
    %195 = arith.addf %193, %194 : vector<8x32xf32>
    %cst_66 = arith.constant 5.000000e-01 : f32
    %196 = vector.broadcast %cst_66 : f32 to vector<8x32xf32>
    %197 = arith.mulf %196, %195 : vector<8x32xf32>
    %198 = arith.mulf %191, %175 : vector<8x32xf32>
    %199 = arith.mulf %186, %192 : vector<8x32xf32>
    %200 = arith.addf %198, %199 : vector<8x32xf32>
    %201 = math.tanh %200 : vector<8x32xf32>
    %202 = arith.mulf %197, %201 : vector<8x32xf32>
    %203 = tpu.concatenate %27, %52, %77, %102, %127, %152, %177, %202 in 0 : vector<8x32xf32>, vector<8x32xf32>, vector<8x32xf32>, vector<8x32xf32>, vector<8x32xf32>, vector<8x32xf32>, vector<8x32xf32>, vector<8x32xf32> -> vector<64x32xf32>
    %cst_67 = arith.constant 0.000000e+00 : f32
    %204 = vector.broadcast %cst_67 : f32 to vector<64x32xf32>
    %205 = arith.maximumf %203, %204 : vector<64x32xf32>
    %c0_68 = arith.constant 0 : index
    %c0_69 = arith.constant 0 : index
    %206 = vector.load %arg3[%c0_68, %c0_69] : memref<32x128xf32, #tpu.memory_space<vmem>>, vector<32x128xf32>
    %cst_70 = arith.constant dense<0.000000e+00> : vector<64x128xf32>
    %207 = tpu.matmul %205, %206, %cst_70 {dimension_numbers = #tpu.dot_dimension_numbers<[1], [0], [0], [1], [0, 0, 1, 1], [], []>} : vector<64x32xf32>, vector<32x128xf32>, vector<64x128xf32> -> vector<64x128xf32>
    %c0_71 = arith.constant 0 : index
    %c0_72 = arith.constant 0 : index
    %208 = vector.load %arg4[%c0_71, %c0_72] : memref<1x128xf32, #tpu.memory_space<vmem>>, vector<1x128xf32>
    %209 = vector.broadcast %208 : vector<1x128xf32> to vector<64x128xf32>
    %210 = arith.addf %207, %209 : vector<64x128xf32>
    %cst_73 = arith.constant dense<0xFF800000> : vector<64xf32>
    %211 = vector.multi_reduction <maximumf>, %210, %cst_73 [1] : vector<64x128xf32> to vector<64xf32>
    %212 = vector.shape_cast %211 : vector<64xf32> to vector<64x1xf32>
    %213 = vector.broadcast %212 : vector<64x1xf32> to vector<64x128xf32>
    %214 = arith.subf %210, %213 : vector<64x128xf32>
    %215 = math.exp %214 : vector<64x128xf32>
    %cst_74 = arith.constant dense<0.000000e+00> : vector<64xf32>
    %216 = vector.multi_reduction <add>, %215, %cst_74 [1] : vector<64x128xf32> to vector<64xf32>
    %217 = vector.shape_cast %216 : vector<64xf32> to vector<64x1xf32>
    %218 = tpu.reciprocal %217 : vector<64x1xf32> -> vector<64x1xf32>
    %219 = vector.broadcast %218 : vector<64x1xf32> to vector<64x128xf32>
    %220 = arith.mulf %215, %219 : vector<64x128xf32>
    %c0_75 = arith.constant 0 : index
    %c0_76 = arith.constant 0 : index
    %221 = vector.load %arg5[%c0_75, %c0_76] : memref<64x128xf32, #tpu.memory_space<vmem>>, vector<64x128xf32>
    tpu.vector_store %arg5[%c0_75, %c0_76], %220 {strides = array<i32>} : memref<64x128xf32, #tpu.memory_space<vmem>>, vector<64x128xf32>,
    return
  }
  func.func @transform_0(%arg0: i32) -> (i32, i32) {
    %c0_i32 = arith.constant 0 : i32
    %c0_i32_0 = arith.constant 0 : i32
    %c0_i32_1 = arith.constant 0 : i32
    return %c0_i32, %c0_i32_0 : i32, i32
  }
  func.func @transform_1(%arg0: i32) -> (i32, i32) {
    %c0_i32 = arith.constant 0 : i32
    %c0_i32_0 = arith.constant 0 : i32
    %c0_i32_1 = arith.constant 0 : i32
    return %c0_i32, %c0_i32_0 : i32, i32
  }
  func.func @transform_2(%arg0: i32) -> (i32, i32) {
    %c0_i32 = arith.constant 0 : i32
    %c0_i32_0 = arith.constant 0 : i32
    %c0_i32_1 = arith.constant 0 : i32
    return %c0_i32, %c0_i32_0 : i32, i32
  }
  func.func @transform_3(%arg0: i32) -> (i32, i32) {
    %c0_i32 = arith.constant 0 : i32
    %c0_i32_0 = arith.constant 0 : i32
    %c0_i32_1 = arith.constant 0 : i32
    return %c0_i32, %c0_i32_0 : i32, i32
  }
  func.func @transform_4(%arg0: i32) -> (i32, i32) {
    %c0_i32 = arith.constant 0 : i32
    %c0_i32_0 = arith.constant 0 : i32
    %c0_i32_1 = arith.constant 0 : i32
    return %c0_i32, %c0_i32_0 : i32, i32
  }
}

</mosaic_0001>

<llo_original>
// kernel: sentence_classifier_forward.1
$region0: #{sentence_classifier_forward.1}
  #allocation0 [shape = 'u32[]', space=smem, size = 0x4, offset = 0x4, fixed_abs, tag = 'smem constant byte address 0x4 - core index']
  #allocation1 [shape = 'u32[144,128]{1,0:T(1,128)}', space=vmem, size = 0x12000, scoped, tag = 'internal scratch']
  %s0 = inlined_call_operand.vmem [shape: f32[64,128], index: 0, kind: input, shape index: {}]
  %s1 = inlined_call_operand.vmem [shape: f32[32,128], index: 1, kind: input, shape index: {}]
  %s2 = inlined_call_operand.vmem [shape: f32[32,128], index: 2, kind: input, shape index: {}]
  %s3 = inlined_call_operand.vmem [shape: f32[1,128], index: 3, kind: input, shape index: {}]
  %s4 = inlined_call_operand.vmem [shape: f32[64,128], index: 4, kind: output, shape index: {}]
  %s5 = sld [smem:[#allocation0]]
  $region26: #{sentence_classifier_forward.1} parent=0
    _
  %s7 = ssub.s32 1, %s5
  %s8 = scalar_select 0, %s7, %s5
  // Predicated region
  $region2: #{sentence_classifier_forward.1} parent=0 // pred_check
    _
  $region3: #{sentence_classifier_forward.1} parent=0 // pred_check_branch
    %10 = sbr.rel (0) target = $region5
  $region4: #{sentence_classifier_forward.1} parent=0 // pred_region
    _
  $region5: #{sentence_classifier_forward.1} parent=0 // pred_fallthru
    _
  // Predicated region
  $region6: #{sentence_classifier_forward.1} parent=0 // pred_check
    _
  $region7: #{sentence_classifier_forward.1} parent=0 // pred_check_branch
    %12 = sbr.rel (0) target = $region9
  $region8: #{sentence_classifier_forward.1} parent=0 // pred_region
    _
  $region9: #{sentence_classifier_forward.1} parent=0 // pred_fallthru
    _
  // Predicated region
  $region10: #{sentence_classifier_forward.1} parent=0 // pred_check
    _
  $region11: #{sentence_classifier_forward.1} parent=0 // pred_check_branch
    %14 = sbr.rel (0) target = $region13
  $region12: #{sentence_classifier_forward.1} parent=0 // pred_region
    _
  $region13: #{sentence_classifier_forward.1} parent=0 // pred_fallthru
    _
  // Predicated region
  $region14: #{sentence_classifier_forward.1} parent=0 // pred_check
    _
  $region15: #{sentence_classifier_forward.1} parent=0 // pred_check_branch
    %16 = sbr.rel (0) target = $region17
  $region16: #{sentence_classifier_forward.1} parent=0 // pred_region
    _
  $region17: #{sentence_classifier_forward.1} parent=0 // pred_fallthru
    _
  %v17 = vld [vmem:[%s1] sm:$0xff]
  %v18 = vld [vmem:[%s1 + $0x8] sm:$0xff]
  %v19 = vld [vmem:[%s1 + $0x10] sm:$0xff]
  %v20 = vld [vmem:[%s1 + $0x18] sm:$0xff]
  %v21 = vld [vmem:[%s0] sm:$0xff]
  %vm22 = vcmask 261120
  %v24 = vsel %vm22, 0.0, 0
  %26 = vmatprep.subr.mxu0 0.0
  %27 = vmatpush1.msra.mxu0 0.0
  %28 = vmatprep.subr.mxu0 0.0
  %29 = vmatpush1.msra.mxu0 0.0
  %30 = vmatprep.subr.mxu0 0.0
  %31 = vmatpush1.msra.mxu0 0.0
  %32 = vmatprep.subr.mxu0 0.0
  %33 = vmatpush1.msra.mxu0 0.0
  %34 = vmatprep.subr.mxu0 0.0
  %35 = vmatpush1.msra.mxu0 0.0
  %36 = vmatprep.subr.mxu0 0.0
  %37 = vmatpush1.msra.mxu0 0.0
  %38 = vmatprep.subr.mxu0 0.0
  %39 = vmatpush1.msra.mxu0 0.0
  %40 = vmatprep.subr.mxu0 0.0
  %41 = vmatpush1.msra.mxu0 0.0
  %42 = vmatprep.subr.mxu0 0.0
  %43 = vmatpush1.msra.mxu0 0.0
  %44 = vmatprep.subr.mxu0 0.0
  %45 = vmatpush1.msra.mxu0 0.0
  %46 = vmatprep.subr.mxu0 0.0
  %47 = vmatpush1.msra.mxu0 0.0
  %48 = vmatprep.subr.mxu0 0.0
  %49 = vmatpush1.msra.mxu0 0.0
  %50 = vmatprep.subr.mxu0 0.0
  %51 = vmatpush1.msra.mxu0 %v20
  %52 = vmatprep.subr.mxu0 0.0
  %53 = vmatpush1.msra.mxu0 %v19
  %54 = vmatprep.subr.mxu0 0.0
  %55 = vmatpush1.msra.mxu0 %v18
  %56 = vmatprep.subr.mxu0 0.0
  %57 = vmatpush1.msra.mxu0 %v17
  %58 = vmatprep.subr.mxu0 0.0
  %59 = vmatpush2.msra.mxu0 0.0
  %60 = vmatprep.subr.mxu0 0.0
  %61 = vmatpush2.msra.mxu0 0.0
  %62 = vmatprep.subr.mxu0 0.0
  %63 = vmatpush2.msra.mxu0 0.0
  %64 = vmatprep.subr.mxu0 0.0
  %65 = vmatpush2.msra.mxu0 0.0
  %66 = vmatprep.subr.mxu0 0.0
  %67 = vmatpush2.msra.mxu0 0.0
  %68 = vmatprep.subr.mxu0 0.0
  %69 = vmatpush2.msra.mxu0 0.0
  %70 = vmatprep.subr.mxu0 0.0
  %71 = vmatpush2.msra.mxu0 0.0
  %72 = vmatprep.subr.mxu0 0.0
  %73 = vmatpush2.msra.mxu0 0.0
  %74 = vmatprep.subr.mxu0 0.0
  %75 = vmatpush2.msra.mxu0 0.0
  %76 = vmatprep.subr.mxu0 0.0
  %77 = vmatpush2.msra.mxu0 0.0
  %78 = vmatprep.subr.mxu0 0.0
  %79 = vmatpush2.msra.mxu0 0.0
  %80 = vmatprep.subr.mxu0 0.0
  %81 = vmatpush2.msra.mxu0 0.0
  %82 = vmatprep.subr.mxu0 0.0
  %83 = vmatpush2.msra.mxu0 0.0
  %84 = vmatprep.subr.mxu0 0.0
  %85 = vmatpush2.msra.mxu0 0.0
  %86 = vmatprep.subr.mxu0 0.0
  %87 = vmatpush2.msra.mxu0 0.0
  %88 = vmatprep.subr.mxu0 0.0
  %89 = vmatpush2.msra.mxu0 0.0
  %90 = vmatprep.mubr.f32.mxu0 0.0
  %91 = vmatmul.mubr.f32.gmra.mxu0 %v24
  %v92 = vpop.f32.mrf.mxu0
  %v93 = vadd.f32 0.0, %v92
  %v94 = vpop.f32.mrf.mxu0
  %95 = vdwg.mxu0
  %v96 = vadd.f32 %v21, %v93
  %v97 = vtanh.pop %v96
  %v98 = vadd.f32 %v97, 1.0
  %v99 = vmul.f32 %v98, 0.5
  %v100 = vmul.f32 %v99, 0.0
  %102 = vrot.lane.b32.xlu0 %v97, 64
  %v103 = vpop.permute.xlu0 %102
  %v105 = vmul.f32 %v99, %v103
  %107 = vrot.lane.b32.xlu0 %v105, 32
  %v108 = vpop.permute.xlu0 %107
  %v110 = vadd.f32 %v100, %v108
  %v111 = vtanh.pop %v110
  %113 = vrot.lane.b32.xlu0 %v111, 64
  %v114 = vpop.permute.xlu0 %113
  %v116 = vmul.f32 %v99, %v114
  %v117 = vld [vmem:[%s0 + $0x8] sm:$0xff]
  %119 = vrot.lane.b32.xlu0 %v116, 32
  %v120 = vpop.permute.xlu0 %119
  %v121 = vsel %vm22, %v120, 0
  %123 = vmatprep.subr.mxu0 0.0
  %124 = vmatpush1.msra.mxu0 0.0
  %125 = vmatprep.subr.mxu0 0.0
  %126 = vmatpush1.msra.mxu0 0.0
  %127 = vmatprep.subr.mxu0 0.0
  %128 = vmatpush1.msra.mxu0 0.0
  %129 = vmatprep.subr.mxu0 0.0
  %130 = vmatpush1.msra.mxu0 0.0
  %131 = vmatprep.subr.mxu0 0.0
  %132 = vmatpush1.msra.mxu0 0.0
  %133 = vmatprep.subr.mxu0 0.0
  %134 = vmatpush1.msra.mxu0 0.0
  %135 = vmatprep.subr.mxu0 0.0
  %136 = vmatpush1.msra.mxu0 0.0
  %137 = vmatprep.subr.mxu0 0.0
  %138 = vmatpush1.msra.mxu0 0.0
  %139 = vmatprep.subr.mxu0 0.0
  %140 = vmatpush1.msra.mxu0 0.0
  %141 = vmatprep.subr.mxu0 0.0
  %142 = vmatpush1.msra.mxu0 0.0
  %143 = vmatprep.subr.mxu0 0.0
  %144 = vmatpush1.msra.mxu0 0.0
  %145 = vmatprep.subr.mxu0 0.0
  %146 = vmatpush1.msra.mxu0 0.0
  %147 = vmatprep.subr.mxu0 0.0
  %148 = vmatpush1.msra.mxu0 %v20
  %149 = vmatprep.subr.mxu0 0.0
  %150 = vmatpush1.msra.mxu0 %v19
  %151 = vmatprep.subr.mxu0 0.0
  %152 = vmatpush1.msra.mxu0 %v18
  %153 = vmatprep.subr.mxu0 0.0
  %154 = vmatpush1.msra.mxu0 %v17
  %155 = vmatprep.subr.mxu0 0.0
  %156 = vmatpush2.msra.mxu0 0.0
  %157 = vmatprep.subr.mxu0 0.0
  %158 = vmatpush2.msra.mxu0 0.0
  %159 = vmatprep.subr.mxu0 0.0
  %160 = vmatpush2.msra.mxu0 0.0
  %161 = vmatprep.subr.mxu0 0.0
  %162 = vmatpush2.msra.mxu0 0.0
  %163 = vmatprep.subr.mxu0 0.0
  %164 = vmatpush2.msra.mxu0 0.0
  %165 = vmatprep.subr.mxu0 0.0
  %166 = vmatpush2.msra.mxu0 0.0
  %167 = vmatprep.subr.mxu0 0.0
  %168 = vmatpush2.msra.mxu0 0.0
  %169 = vmatprep.subr.mxu0 0.0
  %170 = vmatpush2.msra.mxu0 0.0
  %171 = vmatprep.subr.mxu0 0.0
  %172 = vmatpush2.msra.mxu0 0.0
  %173 = vmatprep.subr.mxu0 0.0
  %174 = vmatpush2.msra.mxu0 0.0
  %175 = vmatprep.subr.mxu0 0.0
  %176 = vmatpush2.msra.mxu0 0.0
  %177 = vmatprep.subr.mxu0 0.0
  %178 = vmatpush2.msra.mxu0 0.0
  %179 = vmatprep.subr.mxu0 0.0
  %180 = vmatpush2.msra.mxu0 0.0
  %181 = vmatprep.subr.mxu0 0.0
  %182 = vmatpush2.msra.mxu0 0.0
  %183 = vmatprep.subr.mxu0 0.0
  %184 = vmatpush2.msra.mxu0 0.0
  %185 = vmatprep.subr.mxu0 0.0
  %186 = vmatpush2.msra.mxu0 0.0
  %187 = vmatprep.mubr.f32.mxu0 0.0
  %188 = vmatmul.mubr.f32.gmra.mxu0 %v121
  %v189 = vpop.f32.mrf.mxu0
  %v190 = vadd.f32 0.0, %v189
  %v191 = vpop.f32.mrf.mxu0
  %192 = vdwg.mxu0
  %v193 = vadd.f32 %v117, %v190
  %v194 = vtanh.pop %v193
  %v195 = vadd.f32 %v194, 1.0
  %v196 = vmul.f32 %v195, 0.5
  %v197 = vmul.f32 %v196, %v110
  %199 = vrot.lane.b32.xlu0 %v194, 64
  %v200 = vpop.permute.xlu0 %199
  %v202 = vmul.f32 %v196, %v200
  %204 = vrot.lane.b32.xlu0 %v202, 32
  %v205 = vpop.permute.xlu0 %204
  %v207 = vadd.f32 %v197, %v205
  %v208 = vtanh.pop %v207
  %210 = vrot.lane.b32.xlu0 %v208, 64
  %v211 = vpop.permute.xlu0 %210
  %v213 = vmul.f32 %v196, %v211
  %v214 = vld [vmem:[%s0 + $0x10] sm:$0xff]
  %216 = vrot.lane.b32.xlu0 %v213, 32
  %v217 = vpop.permute.xlu0 %216
  %v218 = vsel %vm22, %v217, 0
  %220 = vmatprep.subr.mxu0 0.0
  %221 = vmatpush1.msra.mxu0 0.0
  %222 = vmatprep.subr.mxu0 0.0
  %223 = vmatpush1.msra.mxu0 0.0
  %224 = vmatprep.subr.mxu0 0.0
  %225 = vmatpush1.msra.mxu0 0.0
  %226 = vmatprep.subr.mxu0 0.0
  %227 = vmatpush1.msra.mxu0 0.0
  %228 = vmatprep.subr.mxu0 0.0
  %229 = vmatpush1.msra.mxu0 0.0
  %230 = vmatprep.subr.mxu0 0.0
  %231 = vmatpush1.msra.mxu0 0.0
  %232 = vmatprep.subr.mxu0 0.0
  %233 = vmatpush1.msra.mxu0 0.0
  %234 = vmatprep.subr.mxu0 0.0
  %235 = vmatpush1.msra.mxu0 0.0
  %236 = vmatprep.subr.mxu0 0.0
  %237 = vmatpush1.msra.mxu0 0.0
  %238 = vmatprep.subr.mxu0 0.0
  %239 = vmatpush1.msra.mxu0 0.0
  %240 = vmatprep.subr.mxu0 0.0
  %241 = vmatpush1.msra.mxu0 0.0
  %242 = vmatprep.subr.mxu0 0.0
  %243 = vmatpush1.msra.mxu0 0.0
  %244 = vmatprep.subr.mxu0 0.0
  %245 = vmatpush1.msra.mxu0 %v20
  %246 = vmatprep.subr.mxu0 0.0
  %247 = vmatpush1.msra.mxu0 %v19
  %248 = vmatprep.subr.mxu0 0.0
  %249 = vmatpush1.msra.mxu0 %v18
  %250 = vmatprep.subr.mxu0 0.0
  %251 = vmatpush1.msra.mxu0 %v17
  %252 = vmatprep.subr.mxu0 0.0
  %253 = vmatpush2.msra.mxu0 0.0
  %254 = vmatprep.subr.mxu0 0.0
  %255 = vmatpush2.msra.mxu0 0.0
  %256 = vmatprep.subr.mxu0 0.0
  %257 = vmatpush2.msra.mxu0 0.0
  %258 = vmatprep.subr.mxu0 0.0
  %259 = vmatpush2.msra.mxu0 0.0
  %260 = vmatprep.subr.mxu0 0.0
  %261 = vmatpush2.msra.mxu0 0.0
  %262 = vmatprep.subr.mxu0 0.0
  %263 = vmatpush2.msra.mxu0 0.0
  %264 = vmatprep.subr.mxu0 0.0
  %265 = vmatpush2.msra.mxu0 0.0
  %266 = vmatprep.subr.mxu0 0.0
  %267 = vmatpush2.msra.mxu0 0.0
  %268 = vmatprep.subr.mxu0 0.0
  %269 = vmatpush2.msra.mxu0 0.0
  %270 = vmatprep.subr.mxu0 0.0
  %271 = vmatpush2.msra.mxu0 0.0
  %272 = vmatprep.subr.mxu0 0.0
  %273 = vmatpush2.msra.mxu0 0.0
  %274 = vmatprep.subr.mxu0 0.0
  %275 = vmatpush2.msra.mxu0 0.0
  %276 = vmatprep.subr.mxu0 0.0
  %277 = vmatpush2.msra.mxu0 0.0
  %278 = vmatprep.subr.mxu0 0.0
  %279 = vmatpush2.msra.mxu0 0.0
  %280 = vmatprep.subr.mxu0 0.0
  %281 = vmatpush2.msra.mxu0 0.0
  %282 = vmatprep.subr.mxu0 0.0
  %283 = vmatpush2.msra.mxu0 0.0
  %284 = vmatprep.mubr.f32.mxu0 0.0
  %285 = vmatmul.mubr.f32.gmra.mxu0 %v218
  %v286 = vpop.f32.mrf.mxu0
  %v287 = vadd.f32 0.0, %v286
  %v288 = vpop.f32.mrf.mxu0
  %289 = vdwg.mxu0
  %v290 = vadd.f32 %v214, %v287
  %v291 = vtanh.pop %v290
  %v292 = vadd.f32 %v291, 1.0
  %v293 = vmul.f32 %v292, 0.5
  %v294 = vmul.f32 %v293, %v207
  %296 = vrot.lane.b32.xlu0 %v291, 64
  %v297 = vpop.permute.xlu0 %296
  %v299 = vmul.f32 %v293, %v297
  %301 = vrot.lane.b32.xlu0 %v299, 32
  %v302 = vpop.permute.xlu0 %301
  %v304 = vadd.f32 %v294, %v302
  %v305 = vtanh.pop %v304
  %307 = vrot.lane.b32.xlu0 %v305, 64
  %v308 = vpop.permute.xlu0 %307
  %v310 = vmul.f32 %v293, %v308
  %v311 = vld [vmem:[%s0 + $0x18] sm:$0xff]
  %313 = vrot.lane.b32.xlu0 %v310, 32
  %v314 = vpop.permute.xlu0 %313
  %v315 = vsel %vm22, %v314, 0
  %317 = vmatprep.subr.mxu0 0.0
  %318 = vmatpush1.msra.mxu0 0.0
  %319 = vmatprep.subr.mxu0 0.0
  %320 = vmatpush1.msra.mxu0 0.0
  %321 = vmatprep.subr.mxu0 0.0
  %322 = vmatpush1.msra.mxu0 0.0
  %323 = vmatprep.subr.mxu0 0.0
  %324 = vmatpush1.msra.mxu0 0.0
  %325 = vmatprep.subr.mxu0 0.0
  %326 = vmatpush1.msra.mxu0 0.0
  %327 = vmatprep.subr.mxu0 0.0
  %328 = vmatpush1.msra.mxu0 0.0
  %329 = vmatprep.subr.mxu0 0.0
  %330 = vmatpush1.msra.mxu0 0.0
  %331 = vmatprep.subr.mxu0 0.0
  %332 = vmatpush1.msra.mxu0 0.0
  %333 = vmatprep.subr.mxu0 0.0
  %334 = vmatpush1.msra.mxu0 0.0
  %335 = vmatprep.subr.mxu0 0.0
  %336 = vmatpush1.msra.mxu0 0.0
  %337 = vmatprep.subr.mxu0 0.0
  %338 = vmatpush1.msra.mxu0 0.0
  %339 = vmatprep.subr.mxu0 0.0
  %340 = vmatpush1.msra.mxu0 0.0
  %341 = vmatprep.subr.mxu0 0.0
  %342 = vmatpush1.msra.mxu0 %v20
  %343 = vmatprep.subr.mxu0 0.0
  %344 = vmatpush1.msra.mxu0 %v19
  %345 = vmatprep.subr.mxu0 0.0
  %346 = vmatpush1.msra.mxu0 %v18
  %347 = vmatprep.subr.mxu0 0.0
  %348 = vmatpush1.msra.mxu0 %v17
  %349 = vmatprep.subr.mxu0 0.0
  %350 = vmatpush2.msra.mxu0 0.0
  %351 = vmatprep.subr.mxu0 0.0
  %352 = vmatpush2.msra.mxu0 0.0
  %353 = vmatprep.subr.mxu0 0.0
  %354 = vmatpush2.msra.mxu0 0.0
  %355 = vmatprep.subr.mxu0 0.0
  %356 = vmatpush2.msra.mxu0 0.0
  %357 = vmatprep.subr.mxu0 0.0
  %358 = vmatpush2.msra.mxu0 0.0
  %359 = vmatprep.subr.mxu0 0.0
  %360 = vmatpush2.msra.mxu0 0.0
  %361 = vmatprep.subr.mxu0 0.0
  %362 = vmatpush2.msra.mxu0 0.0
  %363 = vmatprep.subr.mxu0 0.0
  %364 = vmatpush2.msra.mxu0 0.0
  %365 = vmatprep.subr.mxu0 0.0
  %366 = vmatpush2.msra.mxu0 0.0
  %367 = vmatprep.subr.mxu0 0.0
  %368 = vmatpush2.msra.mxu0 0.0
  %369 = vmatprep.subr.mxu0 0.0
  %370 = vmatpush2.msra.mxu0 0.0
  %371 = vmatprep.subr.mxu0 0.0
  %372 = vmatpush2.msra.mxu0 0.0
  %373 = vmatprep.subr.mxu0 0.0
  %374 = vmatpush2.msra.mxu0 0.0
  %375 = vmatprep.subr.mxu0 0.0
  %376 = vmatpush2.msra.mxu0 0.0
  %377 = vmatprep.subr.mxu0 0.0
  %378 = vmatpush2.msra.mxu0 0.0
  %379 = vmatprep.subr.mxu0 0.0
  %380 = vmatpush2.msra.mxu0 0.0
  %381 = vmatprep.mubr.f32.mxu0 0.0
  %382 = vmatmul.mubr.f32.gmra.mxu0 %v315
  %v383 = vpop.f32.mrf.mxu0
  %v384 = vadd.f32 0.0, %v383
  %v385 = vpop.f32.mrf.mxu0
  %386 = vdwg.mxu0
  %v387 = vadd.f32 %v311, %v384
  %v388 = vtanh.pop %v387
  %v389 = vadd.f32 %v388, 1.0
  %v390 = vmul.f32 %v389, 0.5
  %v391 = vmul.f32 %v390, %v304
  %393 = vrot.lane.b32.xlu0 %v388, 64
  %v394 = vpop.permute.xlu0 %393
  %v396 = vmul.f32 %v390, %v394
  %398 = vrot.lane.b32.xlu0 %v396, 32
  %v399 = vpop.permute.xlu0 %398
  %v401 = vadd.f32 %v391, %v399
  %v402 = vtanh.pop %v401
  %404 = vrot.lane.b32.xlu0 %v402, 64
  %v405 = vpop.permute.xlu0 %404
  %v407 = vmul.f32 %v390, %v405
  %v408 = vld [vmem:[%s0 + $0x20] sm:$0xff]
  %410 = vrot.lane.b32.xlu0 %v407, 32
  %v411 = vpop.permute.xlu0 %410
  %v412 = vsel %vm22, %v411, 0
  %414 = vmatprep.subr.mxu0 0.0
  %415 = vmatpush1.msra.mxu0 0.0
  %416 = vmatprep.subr.mxu0 0.0
  %417 = vmatpush1.msra.mxu0 0.0
  %418 = vmatprep.subr.mxu0 0.0
  %419 = vmatpush1.msra.mxu0 0.0
  %420 = vmatprep.subr.mxu0 0.0
  %421 = vmatpush1.msra.mxu0 0.0
  %422 = vmatprep.subr.mxu0 0.0
  %423 = vmatpush1.msra.mxu0 0.0
  %424 = vmatprep.subr.mxu0 0.0
  %425 = vmatpush1.msra.mxu0 0.0
  %426 = vmatprep.subr.mxu0 0.0
  %427 = vmatpush1.msra.mxu0 0.0
  %428 = vmatprep.subr.mxu0 0.0
  %429 = vmatpush1.msra.mxu0 0.0
  %430 = vmatprep.subr.mxu0 0.0
  %431 = vmatpush1.msra.mxu0 0.0
  %432 = vmatprep.subr.mxu0 0.0
  %433 = vmatpush1.msra.mxu0 0.0
  %434 = vmatprep.subr.mxu0 0.0
  %435 = vmatpush1.msra.mxu0 0.0
  %436 = vmatprep.subr.mxu0 0.0
  %437 = vmatpush1.msra.mxu0 0.0
  %438 = vmatprep.subr.mxu0 0.0
  %439 = vmatpush1.msra.mxu0 %v20
  %440 = vmatprep.subr.mxu0 0.0
  %441 = vmatpush1.msra.mxu0 %v19
  %442 = vmatprep.subr.mxu0 0.0
  %443 = vmatpush1.msra.mxu0 %v18
  %444 = vmatprep.subr.mxu0 0.0
  %445 = vmatpush1.msra.mxu0 %v17
  %446 = vmatprep.subr.mxu0 0.0
  %447 = vmatpush2.msra.mxu0 0.0
  %448 = vmatprep.subr.mxu0 0.0
  %449 = vmatpush2.msra.mxu0 0.0
  %450 = vmatprep.subr.mxu0 0.0
  %451 = vmatpush2.msra.mxu0 0.0
  %452 = vmatprep.subr.mxu0 0.0
  %453 = vmatpush2.msra.mxu0 0.0
  %454 = vmatprep.subr.mxu0 0.0
  %455 = vmatpush2.msra.mxu0 0.0
  %456 = vmatprep.subr.mxu0 0.0
  %457 = vmatpush2.msra.mxu0 0.0
  %458 = vmatprep.subr.mxu0 0.0
  %459 = vmatpush2.msra.mxu0 0.0
  %460 = vmatprep.subr.mxu0 0.0
  %461 = vmatpush2.msra.mxu0 0.0
  %462 = vmatprep.subr.mxu0 0.0
  %463 = vmatpush2.msra.mxu0 0.0
  %464 = vmatprep.subr.mxu0 0.0
  %465 = vmatpush2.msra.mxu0 0.0
  %466 = vmatprep.subr.mxu0 0.0
  %467 = vmatpush2.msra.mxu0 0.0
  %468 = vmatprep.subr.mxu0 0.0
  %469 = vmatpush2.msra.mxu0 0.0
  %470 = vmatprep.subr.mxu0 0.0
  %471 = vmatpush2.msra.mxu0 0.0
  %472 = vmatprep.subr.mxu0 0.0
  %473 = vmatpush2.msra.mxu0 0.0
  %474 = vmatprep.subr.mxu0 0.0
  %475 = vmatpush2.msra.mxu0 0.0
  %476 = vmatprep.subr.mxu0 0.0
  %477 = vmatpush2.msra.mxu0 0.0
  %478 = vmatprep.mubr.f32.mxu0 0.0
  %479 = vmatmul.mubr.f32.gmra.mxu0 %v412
  %v480 = vpop.f32.mrf.mxu0
  %v481 = vadd.f32 0.0, %v480
  %v482 = vpop.f32.mrf.mxu0
  %483 = vdwg.mxu0
  %v484 = vadd.f32 %v408, %v481
  %v485 = vtanh.pop %v484
  %v486 = vadd.f32 %v485, 1.0
  %v487 = vmul.f32 %v486, 0.5
  %v488 = vmul.f32 %v487, %v401
  %490 = vrot.lane.b32.xlu0 %v485, 64
  %v491 = vpop.permute.xlu0 %490
  %v493 = vmul.f32 %v487, %v491
  %495 = vrot.lane.b32.xlu0 %v493, 32
  %v496 = vpop.permute.xlu0 %495
  %v498 = vadd.f32 %v488, %v496
  %v499 = vtanh.pop %v498
  %501 = vrot.lane.b32.xlu0 %v499, 64
  %v502 = vpop.permute.xlu0 %501
  %v504 = vmul.f32 %v487, %v502
  %v505 = vld [vmem:[%s0 + $0x28] sm:$0xff]
  %507 = vrot.lane.b32.xlu0 %v504, 32
  %v508 = vpop.permute.xlu0 %507
  %v509 = vsel %vm22, %v508, 0
  %511 = vmatprep.subr.mxu0 0.0
  %512 = vmatpush1.msra.mxu0 0.0
  %513 = vmatprep.subr.mxu0 0.0
  %514 = vmatpush1.msra.mxu0 0.0
  %515 = vmatprep.subr.mxu0 0.0
  %516 = vmatpush1.msra.mxu0 0.0
  %517 = vmatprep.subr.mxu0 0.0
  %518 = vmatpush1.msra.mxu0 0.0
  %519 = vmatprep.subr.mxu0 0.0
  %520 = vmatpush1.msra.mxu0 0.0
  %521 = vmatprep.subr.mxu0 0.0
  %522 = vmatpush1.msra.mxu0 0.0
  %523 = vmatprep.subr.mxu0 0.0
  %524 = vmatpush1.msra.mxu0 0.0
  %525 = vmatprep.subr.mxu0 0.0
  %526 = vmatpush1.msra.mxu0 0.0
  %527 = vmatprep.subr.mxu0 0.0
  %528 = vmatpush1.msra.mxu0 0.0
  %529 = vmatprep.subr.mxu0 0.0
  %530 = vmatpush1.msra.mxu0 0.0
  %531 = vmatprep.subr.mxu0 0.0
  %532 = vmatpush1.msra.mxu0 0.0
  %533 = vmatprep.subr.mxu0 0.0
  %534 = vmatpush1.msra.mxu0 0.0
  %535 = vmatprep.subr.mxu0 0.0
  %536 = vmatpush1.msra.mxu0 %v20
  %537 = vmatprep.subr.mxu0 0.0
  %538 = vmatpush1.msra.mxu0 %v19
  %539 = vmatprep.subr.mxu0 0.0
  %540 = vmatpush1.msra.mxu0 %v18
  %541 = vmatprep.subr.mxu0 0.0
  %542 = vmatpush1.msra.mxu0 %v17
  %543 = vmatprep.subr.mxu0 0.0
  %544 = vmatpush2.msra.mxu0 0.0
  %545 = vmatprep.subr.mxu0 0.0
  %546 = vmatpush2.msra.mxu0 0.0
  %547 = vmatprep.subr.mxu0 0.0
  %548 = vmatpush2.msra.mxu0 0.0
  %549 = vmatprep.subr.mxu0 0.0
  %550 = vmatpush2.msra.mxu0 0.0
  %551 = vmatprep.subr.mxu0 0.0
  %552 = vmatpush2.msra.mxu0 0.0
  %553 = vmatprep.subr.mxu0 0.0
  %554 = vmatpush2.msra.mxu0 0.0
  %555 = vmatprep.subr.mxu0 0.0
  %556 = vmatpush2.msra.mxu0 0.0
  %557 = vmatprep.subr.mxu0 0.0
  %558 = vmatpush2.msra.mxu0 0.0
  %559 = vmatprep.subr.mxu0 0.0
  %560 = vmatpush2.msra.mxu0 0.0
  %561 = vmatprep.subr.mxu0 0.0
  %562 = vmatpush2.msra.mxu0 0.0
  %563 = vmatprep.subr.mxu0 0.0
  %564 = vmatpush2.msra.mxu0 0.0
  %565 = vmatprep.subr.mxu0 0.0
  %566 = vmatpush2.msra.mxu0 0.0
  %567 = vmatprep.subr.mxu0 0.0
  %568 = vmatpush2.msra.mxu0 0.0
  %569 = vmatprep.subr.mxu0 0.0
  %570 = vmatpush2.msra.mxu0 0.0
  %571 = vmatprep.subr.mxu0 0.0
  %572 = vmatpush2.msra.mxu0 0.0
  %573 = vmatprep.subr.mxu0 0.0
  %574 = vmatpush2.msra.mxu0 0.0
  %575 = vmatprep.mubr.f32.mxu0 0.0
  %576 = vmatmul.mubr.f32.gmra.mxu0 %v509
  %v577 = vpop.f32.mrf.mxu0
  %v578 = vadd.f32 0.0, %v577
  %v579 = vpop.f32.mrf.mxu0
  %580 = vdwg.mxu0
  %v581 = vadd.f32 %v505, %v578
  %v582 = vtanh.pop %v581
  %v583 = vadd.f32 %v582, 1.0
  %v584 = vmul.f32 %v583, 0.5
  %v585 = vmul.f32 %v584, %v498
  %587 = vrot.lane.b32.xlu0 %v582, 64
  %v588 = vpop.permute.xlu0 %587
  %v590 = vmul.f32 %v584, %v588
  %592 = vrot.lane.b32.xlu0 %v590, 32
  %v593 = vpop.permute.xlu0 %592
  %v595 = vadd.f32 %v585, %v593
  %v596 = vtanh.pop %v595
  %598 = vrot.lane.b32.xlu0 %v596, 64
  %v599 = vpop.permute.xlu0 %598
  %v601 = vmul.f32 %v584, %v599
  %v602 = vld [vmem:[%s0 + $0x30] sm:$0xff]
  %604 = vrot.lane.b32.xlu0 %v601, 32
  %v605 = vpop.permute.xlu0 %604
  %v606 = vsel %vm22, %v605, 0
  %608 = vmatprep.subr.mxu0 0.0
  %609 = vmatpush1.msra.mxu0 0.0
  %610 = vmatprep.subr.mxu0 0.0
  %611 = vmatpush1.msra.mxu0 0.0
  %612 = vmatprep.subr.mxu0 0.0
  %613 = vmatpush1.msra.mxu0 0.0
  %614 = vmatprep.subr.mxu0 0.0
  %615 = vmatpush1.msra.mxu0 0.0
  %616 = vmatprep.subr.mxu0 0.0
  %617 = vmatpush1.msra.mxu0 0.0
  %618 = vmatprep.subr.mxu0 0.0
  %619 = vmatpush1.msra.mxu0 0.0
  %620 = vmatprep.subr.mxu0 0.0
  %621 = vmatpush1.msra.mxu0 0.0
  %622 = vmatprep.subr.mxu0 0.0
  %623 = vmatpush1.msra.mxu0 0.0
  %624 = vmatprep.subr.mxu0 0.0
  %625 = vmatpush1.msra.mxu0 0.0
  %626 = vmatprep.subr.mxu0 0.0
  %627 = vmatpush1.msra.mxu0 0.0
  %628 = vmatprep.subr.mxu0 0.0
  %629 = vmatpush1.msra.mxu0 0.0
  %630 = vmatprep.subr.mxu0 0.0
  %631 = vmatpush1.msra.mxu0 0.0
  %632 = vmatprep.subr.mxu0 0.0
  %633 = vmatpush1.msra.mxu0 %v20
  %634 = vmatprep.subr.mxu0 0.0
  %635 = vmatpush1.msra.mxu0 %v19
  %636 = vmatprep.subr.mxu0 0.0
  %637 = vmatpush1.msra.mxu0 %v18
  %638 = vmatprep.subr.mxu0 0.0
  %639 = vmatpush1.msra.mxu0 %v17
  %640 = vmatprep.subr.mxu0 0.0
  %641 = vmatpush2.msra.mxu0 0.0
  %642 = vmatprep.subr.mxu0 0.0
  %643 = vmatpush2.msra.mxu0 0.0
  %644 = vmatprep.subr.mxu0 0.0
  %645 = vmatpush2.msra.mxu0 0.0
  %646 = vmatprep.subr.mxu0 0.0
  %647 = vmatpush2.msra.mxu0 0.0
  %648 = vmatprep.subr.mxu0 0.0
  %649 = vmatpush2.msra.mxu0 0.0
  %650 = vmatprep.subr.mxu0 0.0
  %651 = vmatpush2.msra.mxu0 0.0
  %652 = vmatprep.subr.mxu0 0.0
  %653 = vmatpush2.msra.mxu0 0.0
  %654 = vmatprep.subr.mxu0 0.0
  %655 = vmatpush2.msra.mxu0 0.0
  %656 = vmatprep.subr.mxu0 0.0
  %657 = vmatpush2.msra.mxu0 0.0
  %658 = vmatprep.subr.mxu0 0.0
  %659 = vmatpush2.msra.mxu0 0.0
  %660 = vmatprep.subr.mxu0 0.0
  %661 = vmatpush2.msra.mxu0 0.0
  %662 = vmatprep.subr.mxu0 0.0
  %663 = vmatpush2.msra.mxu0 0.0
  %664 = vmatprep.subr.mxu0 0.0
  %665 = vmatpush2.msra.mxu0 0.0
  %666 = vmatprep.subr.mxu0 0.0
  %667 = vmatpush2.msra.mxu0 0.0
  %668 = vmatprep.subr.mxu0 0.0
  %669 = vmatpush2.msra.mxu0 0.0
  %670 = vmatprep.subr.mxu0 0.0
  %671 = vmatpush2.msra.mxu0 0.0
  %672 = vmatprep.mubr.f32.mxu0 0.0
  %673 = vmatmul.mubr.f32.gmra.mxu0 %v606
  %v674 = vpop.f32.mrf.mxu0
  %v675 = vadd.f32 0.0, %v674
  %v676 = vpop.f32.mrf.mxu0
  %677 = vdwg.mxu0
  %v678 = vadd.f32 %v602, %v675
  %v679 = vtanh.pop %v678
  %v680 = vadd.f32 %v679, 1.0
  %v681 = vmul.f32 %v680, 0.5
  %v682 = vmul.f32 %v681, %v595
  %684 = vrot.lane.b32.xlu0 %v679, 64
  %v685 = vpop.permute.xlu0 %684
  %v687 = vmul.f32 %v681, %v685
  %689 = vrot.lane.b32.xlu0 %v687, 32
  %v690 = vpop.permute.xlu0 %689
  %v692 = vadd.f32 %v682, %v690
  %v693 = vtanh.pop %v692
  %695 = vrot.lane.b32.xlu0 %v693, 64
  %v696 = vpop.permute.xlu0 %695
  %v698 = vmul.f32 %v681, %v696
  %v699 = vld [vmem:[%s0 + $0x38] sm:$0xff]
  %701 = vrot.lane.b32.xlu0 %v698, 32
  %v702 = vpop.permute.xlu0 %701
  %v703 = vsel %vm22, %v702, 0
  %705 = vmatprep.subr.mxu0 0.0
  %706 = vmatpush1.msra.mxu0 0.0
  %707 = vmatprep.subr.mxu0 0.0
  %708 = vmatpush1.msra.mxu0 0.0
  %709 = vmatprep.subr.mxu0 0.0
  %710 = vmatpush1.msra.mxu0 0.0
  %711 = vmatprep.subr.mxu0 0.0
  %712 = vmatpush1.msra.mxu0 0.0
  %713 = vmatprep.subr.mxu0 0.0
  %714 = vmatpush1.msra.mxu0 0.0
  %715 = vmatprep.subr.mxu0 0.0
  %716 = vmatpush1.msra.mxu0 0.0
  %717 = vmatprep.subr.mxu0 0.0
  %718 = vmatpush1.msra.mxu0 0.0
  %719 = vmatprep.subr.mxu0 0.0
  %720 = vmatpush1.msra.mxu0 0.0
  %721 = vmatprep.subr.mxu0 0.0
  %722 = vmatpush1.msra.mxu0 0.0
  %723 = vmatprep.subr.mxu0 0.0
  %724 = vmatpush1.msra.mxu0 0.0
  %725 = vmatprep.subr.mxu0 0.0
  %726 = vmatpush1.msra.mxu0 0.0
  %727 = vmatprep.subr.mxu0 0.0
  %728 = vmatpush1.msra.mxu0 0.0
  %729 = vmatprep.subr.mxu0 0.0
  %730 = vmatpush1.msra.mxu0 %v20
  %731 = vmatprep.subr.mxu0 0.0
  %732 = vmatpush1.msra.mxu0 %v19
  %733 = vmatprep.subr.mxu0 0.0
  %734 = vmatpush1.msra.mxu0 %v18
  %735 = vmatprep.subr.mxu0 0.0
  %736 = vmatpush1.msra.mxu0 %v17
  %737 = vmatprep.subr.mxu0 0.0
  %738 = vmatpush2.msra.mxu0 0.0
  %739 = vmatprep.subr.mxu0 0.0
  %740 = vmatpush2.msra.mxu0 0.0
  %741 = vmatprep.subr.mxu0 0.0
  %742 = vmatpush2.msra.mxu0 0.0
  %743 = vmatprep.subr.mxu0 0.0
  %744 = vmatpush2.msra.mxu0 0.0
  %745 = vmatprep.subr.mxu0 0.0
  %746 = vmatpush2.msra.mxu0 0.0
  %747 = vmatprep.subr.mxu0 0.0
  %748 = vmatpush2.msra.mxu0 0.0
  %749 = vmatprep.subr.mxu0 0.0
  %750 = vmatpush2.msra.mxu0 0.0
  %751 = vmatprep.subr.mxu0 0.0
  %752 = vmatpush2.msra.mxu0 0.0
  %753 = vmatprep.subr.mxu0 0.0
  %754 = vmatpush2.msra.mxu0 0.0
  %755 = vmatprep.subr.mxu0 0.0
  %756 = vmatpush2.msra.mxu0 0.0
  %757 = vmatprep.subr.mxu0 0.0
  %758 = vmatpush2.msra.mxu0 0.0
  %759 = vmatprep.subr.mxu0 0.0
  %760 = vmatpush2.msra.mxu0 0.0
  %761 = vmatprep.subr.mxu0 0.0
  %762 = vmatpush2.msra.mxu0 0.0
  %763 = vmatprep.subr.mxu0 0.0
  %764 = vmatpush2.msra.mxu0 0.0
  %765 = vmatprep.subr.mxu0 0.0
  %766 = vmatpush2.msra.mxu0 0.0
  %767 = vmatprep.subr.mxu0 0.0
  %768 = vmatpush2.msra.mxu0 0.0
  %769 = vmatprep.mubr.f32.mxu0 0.0
  %770 = vmatmul.mubr.f32.gmra.mxu0 %v703
  %v771 = vpop.f32.mrf.mxu0
  %v772 = vadd.f32 0.0, %v771
  %v773 = vpop.f32.mrf.mxu0
  %774 = vdwg.mxu0
  %v775 = vadd.f32 %v699, %v772
  %v776 = vtanh.pop %v775
  %v777 = vadd.f32 %v776, 1.0
  %v778 = vmul.f32 %v777, 0.5
  %v779 = vmul.f32 %v778, %v692
  %781 = vrot.lane.b32.xlu0 %v776, 64
  %v782 = vpop.permute.xlu0 %781
  %v784 = vmul.f32 %v778, %v782
  %786 = vrot.lane.b32.xlu0 %v784, 32
  %v787 = vpop.permute.xlu0 %786
  %v789 = vadd.f32 %v779, %v787
  %v790 = vtanh.pop %v789
  %792 = vrot.lane.b32.xlu0 %v790, 64
  %v793 = vpop.permute.xlu0 %792
  %v795 = vmul.f32 %v778, %v793
  %v796 = vmax.f32 %v116, 0.0
  %v797 = vmax.f32 %v213, 0.0
  %v798 = vmax.f32 %v310, 0.0
  %v799 = vmax.f32 %v407, 0.0
  %v800 = vmax.f32 %v504, 0.0
  %v801 = vmax.f32 %v601, 0.0
  %v802 = vmax.f32 %v698, 0.0
  %v803 = vmax.f32 %v795, 0.0
  %v804 = vld [vmem:[%s2] sm:$0xff]
  %v805 = vld [vmem:[%s2 + $0x8] sm:$0xff]
  %v806 = vld [vmem:[%s2 + $0x10] sm:$0xff]
  %v807 = vld [vmem:[%s2 + $0x18] sm:$0xff]
  %v808 = vld [vmem:[%s3] sm:$0x1]
  %v810 = vlaneseq
  %v811 = vshrl.u32 %v810, 7
  %v812 = vsub.s32 0, %v811
  %v813 = vrot.slane %v808, %v812
  %823 = vrot.lane.b32.xlu0 %v796, 32
  %v824 = vpop.permute.xlu0 %823
  %825 = vrot.lane.b32.xlu0 %v797, 32
  %v826 = vpop.permute.xlu0 %825
  %827 = vrot.lane.b32.xlu0 %v798, 32
  %v828 = vpop.permute.xlu0 %827
  %829 = vrot.lane.b32.xlu0 %v799, 32
  %v830 = vpop.permute.xlu0 %829
  %831 = vrot.lane.b32.xlu0 %v800, 32
  %v832 = vpop.permute.xlu0 %831
  %833 = vrot.lane.b32.xlu0 %v801, 32
  %v834 = vpop.permute.xlu0 %833
  %835 = vrot.lane.b32.xlu0 %v802, 32
  %v836 = vpop.permute.xlu0 %835
  %837 = vrot.lane.b32.xlu0 %v803, 32
  %v838 = vpop.permute.xlu0 %837
  %v839 = vsel %vm22, %v824, 0
  %v841 = vsel %vm22, %v826, 0
  %v843 = vsel %vm22, %v828, 0
  %v845 = vsel %vm22, %v830, 0
  %v847 = vsel %vm22, %v832, 0
  %v849 = vsel %vm22, %v834, 0
  %v851 = vsel %vm22, %v836, 0
  %v853 = vsel %vm22, %v838, 0
  %855 = vmatprep.subr.mxu0 0.0
  %856 = vmatpush1.msra.mxu0 0.0
  %857 = vmatprep.subr.mxu0 0.0
  %858 = vmatpush1.msra.mxu0 0.0
  %859 = vmatprep.subr.mxu0 0.0
  %860 = vmatpush1.msra.mxu0 0.0
  %861 = vmatprep.subr.mxu0 0.0
  %862 = vmatpush1.msra.mxu0 0.0
  %863 = vmatprep.subr.mxu0 0.0
  %864 = vmatpush1.msra.mxu0 0.0
  %865 = vmatprep.subr.mxu0 0.0
  %866 = vmatpush1.msra.mxu0 0.0
  %867 = vmatprep.subr.mxu0 0.0
  %868 = vmatpush1.msra.mxu0 0.0
  %869 = vmatprep.subr.mxu0 0.0
  %870 = vmatpush1.msra.mxu0 0.0
  %871 = vmatprep.subr.mxu0 0.0
  %872 = vmatpush1.msra.mxu0 0.0
  %873 = vmatprep.subr.mxu0 0.0
  %874 = vmatpush1.msra.mxu0 0.0
  %875 = vmatprep.subr.mxu0 0.0
  %876 = vmatpush1.msra.mxu0 0.0
  %877 = vmatprep.subr.mxu0 0.0
  %878 = vmatpush1.msra.mxu0 0.0
  %879 = vmatprep.subr.mxu0 0.0
  %880 = vmatpush1.msra.mxu0 %v807
  %881 = vmatprep.subr.mxu0 0.0
  %882 = vmatpush1.msra.mxu0 %v806
  %883 = vmatprep.subr.mxu0 0.0
  %884 = vmatpush1.msra.mxu0 %v805
  %885 = vmatprep.subr.mxu0 0.0
  %886 = vmatpush1.msra.mxu0 %v804
  %887 = vmatprep.subr.mxu0 0.0
  %888 = vmatpush2.msra.mxu0 0.0
  %889 = vmatprep.subr.mxu0 0.0
  %890 = vmatpush2.msra.mxu0 0.0
  %891 = vmatprep.subr.mxu0 0.0
  %892 = vmatpush2.msra.mxu0 0.0
  %893 = vmatprep.subr.mxu0 0.0
  %894 = vmatpush2.msra.mxu0 0.0
  %895 = vmatprep.subr.mxu0 0.0
  %896 = vmatpush2.msra.mxu0 0.0
  %897 = vmatprep.subr.mxu0 0.0
  %898 = vmatpush2.msra.mxu0 0.0
  %899 = vmatprep.subr.mxu0 0.0
  %900 = vmatpush2.msra.mxu0 0.0
  %901 = vmatprep.subr.mxu0 0.0
  %902 = vmatpush2.msra.mxu0 0.0
  %903 = vmatprep.subr.mxu0 0.0
  %904 = vmatpush2.msra.mxu0 0.0
  %905 = vmatprep.subr.mxu0 0.0
  %906 = vmatpush2.msra.mxu0 0.0
  %907 = vmatprep.subr.mxu0 0.0
  %908 = vmatpush2.msra.mxu0 0.0
  %909 = vmatprep.subr.mxu0 0.0
  %910 = vmatpush2.msra.mxu0 0.0
  %911 = vmatprep.subr.mxu0 0.0
  %912 = vmatpush2.msra.mxu0 0.0
  %913 = vmatprep.subr.mxu0 0.0
  %914 = vmatpush2.msra.mxu0 0.0
  %915 = vmatprep.subr.mxu0 0.0
  %916 = vmatpush2.msra.mxu0 0.0
  %917 = vmatprep.subr.mxu0 0.0
  %918 = vmatpush2.msra.mxu0 0.0
  %919 = vmatprep.mubr.f32.mxu0 0.0
  %920 = vmatmul.mubr.f32.gmra.mxu0 %v839
  %v921 = vpop.f32.mrf.mxu0
  %v922 = vadd.f32 %v813, %v921
  %v923 = vpop.f32.mrf.mxu0
  %924 = vmatprep.mubr.f32.mxu0 0.0
  %925 = vmatmul.mubr.f32.gmra.mxu0 %v841
  %v926 = vpop.f32.mrf.mxu0
  %v927 = vadd.f32 %v813, %v926
  %v928 = vpop.f32.mrf.mxu0
  %929 = vmatprep.mubr.f32.mxu0 0.0
  %930 = vmatmul.mubr.f32.gmra.mxu0 %v843
  %v931 = vpop.f32.mrf.mxu0
  %v932 = vadd.f32 %v813, %v931
  %v933 = vpop.f32.mrf.mxu0
  %934 = vmatprep.mubr.f32.mxu0 0.0
  %935 = vmatmul.mubr.f32.gmra.mxu0 %v845
  %v936 = vpop.f32.mrf.mxu0
  %v937 = vadd.f32 %v813, %v936
  %v938 = vpop.f32.mrf.mxu0
  %939 = vmatprep.mubr.f32.mxu0 0.0
  %940 = vmatmul.mubr.f32.gmra.mxu0 %v847
  %v941 = vpop.f32.mrf.mxu0
  %v942 = vadd.f32 %v813, %v941
  %v943 = vpop.f32.mrf.mxu0
  %944 = vmatprep.mubr.f32.mxu0 0.0
  %945 = vmatmul.mubr.f32.gmra.mxu0 %v849
  %v946 = vpop.f32.mrf.mxu0
  %v947 = vadd.f32 %v813, %v946
  %v948 = vpop.f32.mrf.mxu0
  %949 = vmatprep.mubr.f32.mxu0 0.0
  %950 = vmatmul.mubr.f32.gmra.mxu0 %v851
  %v951 = vpop.f32.mrf.mxu0
  %v952 = vadd.f32 %v813, %v951
  %v953 = vpop.f32.mrf.mxu0
  %954 = vmatprep.mubr.f32.mxu0 0.0
  %955 = vmatmul.mubr.f32.gmra.mxu0 %v853
  %v956 = vpop.f32.mrf.mxu0
  %v957 = vadd.f32 %v813, %v956
  %v958 = vpop.f32.mrf.mxu0
  %959 = vdwg.mxu0
  %960 = vmax.xlane.f32.xlu0 %v922
  %v961 = vpop.xlane.xlu0 %960
  %962 = vmax.xlane.f32.xlu0 %v927
  %v963 = vpop.xlane.xlu0 %962
  %964 = vmax.xlane.f32.xlu0 %v932
  %v965 = vpop.xlane.xlu0 %964
  %966 = vmax.xlane.f32.xlu0 %v937
  %v967 = vpop.xlane.xlu0 %966
  %968 = vmax.xlane.f32.xlu0 %v942
  %v969 = vpop.xlane.xlu0 %968
  %970 = vmax.xlane.f32.xlu0 %v947
  %v971 = vpop.xlane.xlu0 %970
  %972 = vmax.xlane.f32.xlu0 %v952
  %v973 = vpop.xlane.xlu0 %972
  %974 = vmax.xlane.f32.xlu0 %v957
  %v975 = vpop.xlane.xlu0 %974
  %v976 = vsub.f32 %v922, %v961
  %v977 = vsub.f32 %v927, %v963
  %v978 = vsub.f32 %v932, %v965
  %v979 = vsub.f32 %v937, %v967
  %v980 = vsub.f32 %v942, %v969
  %v981 = vsub.f32 %v947, %v971
  %v982 = vsub.f32 %v952, %v973
  %v983 = vsub.f32 %v957, %v975
  %v984 = vmul.f32 %v976, 1.442695
  %v985 = vpow.pop %v984
  %v986 = vmul.f32 %v977, 1.442695
  %v987 = vpow.pop %v986
  %v988 = vmul.f32 %v978, 1.442695
  %v989 = vpow.pop %v988
  %v990 = vmul.f32 %v979, 1.442695
  %v991 = vpow.pop %v990
  %v992 = vmul.f32 %v980, 1.442695
  %v993 = vpow.pop %v992
  %v994 = vmul.f32 %v981, 1.442695
  %v995 = vpow.pop %v994
  %v996 = vmul.f32 %v982, 1.442695
  %v997 = vpow.pop %v996
  %v998 = vmul.f32 %v983, 1.442695
  %v999 = vpow.pop %v998
  %1000 = vadd.xlane.f32.xlu0 %v985
  %v1001 = vpop.xlane.xlu0 %1000
  %1002 = vadd.xlane.f32.xlu0 %v987
  %v1003 = vpop.xlane.xlu0 %1002
  %1004 = vadd.xlane.f32.xlu0 %v989
  %v1005 = vpop.xlane.xlu0 %1004
  %1006 = vadd.xlane.f32.xlu0 %v991
  %v1007 = vpop.xlane.xlu0 %1006
  %1008 = vadd.xlane.f32.xlu0 %v993
  %v1009 = vpop.xlane.xlu0 %1008
  %1010 = vadd.xlane.f32.xlu0 %v995
  %v1011 = vpop.xlane.xlu0 %1010
  %1012 = vadd.xlane.f32.xlu0 %v997
  %v1013 = vpop.xlane.xlu0 %1012
  %1014 = vadd.xlane.f32.xlu0 %v999
  %v1015 = vpop.xlane.xlu0 %1014
  %v1016 = vrcp.pop %v1001
  %v1017 = vrcp.pop %v1003
  %v1018 = vrcp.pop %v1005
  %v1019 = vrcp.pop %v1007
  %v1020 = vrcp.pop %v1009
  %v1021 = vrcp.pop %v1011
  %v1022 = vrcp.pop %v1013
  %v1023 = vrcp.pop %v1015
  %v1024 = vmul.f32 %v985, %v1016
  %v1025 = vmul.f32 %v987, %v1017
  %v1026 = vmul.f32 %v989, %v1018
  %v1027 = vmul.f32 %v991, %v1019
  %v1028 = vmul.f32 %v993, %v1020
  %v1029 = vmul.f32 %v995, %v1021
  %v1030 = vmul.f32 %v997, %v1022
  %v1031 = vmul.f32 %v999, %v1023
  %1032 = vst [vmem:[%s4] sm:$0xff] %v1024
  %1033 = vst [vmem:[%s4 + $0x8] sm:$0xff] %v1025
  %1034 = vst [vmem:[%s4 + $0x10] sm:$0xff] %v1026
  %1035 = vst [vmem:[%s4 + $0x18] sm:$0xff] %v1027
  %1036 = vst [vmem:[%s4 + $0x20] sm:$0xff] %v1028
  %1037 = vst [vmem:[%s4 + $0x28] sm:$0xff] %v1029
  %1038 = vst [vmem:[%s4 + $0x30] sm:$0xff] %v1030
  %1039 = vst [vmem:[%s4 + $0x38] sm:$0xff] %v1031
  // Predicated region
  $region18: #{sentence_classifier_forward.1} parent=0 // pred_check
    _
  $region19: #{sentence_classifier_forward.1} parent=0 // pred_check_branch
    %1041 = sbr.rel (0) target = $region21
  $region20: #{sentence_classifier_forward.1} parent=0 // pred_region
    _
  $region21: #{sentence_classifier_forward.1} parent=0 // pred_fallthru
    _
  // Predicated region
  $region22: #{sentence_classifier_forward.1} parent=0 // pred_check
    _
  $region23: #{sentence_classifier_forward.1} parent=0 // pred_check_branch
    %1043 = sbr.rel (0) target = $region25
  $region24: #{sentence_classifier_forward.1} parent=0 // pred_region
    _
  $region25: #{sentence_classifier_forward.1} parent=0 // pred_fallthru
    _

</llo_original>
